<compile_context>
chip_gen: v7x
topology: tpu7x:2x2x1
jax: 0.10.0
libtpu: 0.0.40
codegen_flags: <defaults>
</compile_context>

<pallas_src>
import functools

import jax
import jax.numpy as jnp
from jax.experimental import pallas as pl
from jax.experimental.pallas import tpu as pltpu


_NEG_SENTINEL = -2.0   # ignored / padded pixels: more negative than any -prob (>= -1.0)


# ------------------------------------------------------------------ Pallas kernel
def _ohem_prob_loss_kernel(num_classes, ignore_label, pred_ref, tgt_ref, negprob_ref,
                           loss_ref):
    """Streaming softmax over classes with (TR, 128) accumulators only.

    pred_ref   : (C, TR, 128) logits (f32 or bf16; cast per class slice)
    tgt_ref    : (TR, 128)    int32 labels (ignore_label on ignored/padded pixels)
    negprob_ref: (TR, 128)    f32, -softmax_prob[target]; -2.0 sentinel if ignored/padded
    loss_ref   : (TR, 128)    f32, unweighted CE;          0.0 if ignored/padded
    """
    tgt = tgt_ref[...]
    valid = tgt != ignore_label
    tgt_c = jnp.where(valid, tgt, 0)          # ignore -> class 0 (matches torch target*mask)

    # pass 1: running max over classes (no (C, TR, 128) f32 materialization)
    m = pred_ref[0].astype(jnp.float32)
    for c in range(1, num_classes):
        m = jnp.maximum(m, pred_ref[c].astype(jnp.float32))

    # pass 2: softmax denominator + target-class logit / exp, streamed per class
    denom = jnp.zeros_like(m)
    logit_t = jnp.zeros_like(m)
    exp_t = jnp.zeros_like(m)
    for c in range(num_classes):
        lc = pred_ref[c].astype(jnp.float32)
        e = jnp.exp(lc - m)
        denom = denom + e
        is_t = tgt_c == c
        logit_t = jnp.where(is_t, lc, logit_t)
        exp_t = jnp.where(is_t, e, exp_t)

    lse = m + jnp.log(denom)                  # log-sum-exp per pixel
    prob_t = exp_t / denom                    # exact divide: these values feed the OHEM
                                              # threshold comparison, keep full f32 accuracy
    negprob_ref[...] = jnp.where(valid, -prob_t, _NEG_SENTINEL)
    loss_ref[...] = jnp.where(valid, lse - logit_t, 0.0)


# ------------------------------------------------------------------ tiling heuristic
def _choose_tiling(num_classes, pred_itemsize, num_rows, batch):
    """Pick (tile_rows, num_row_tiles, vmem_limit_bytes) from the chip's VMEM capacity."""
    try:
        vmem_cap = int(pltpu.get_tpu_info().vmem_capacity_bytes)
    except Exception:                         # conservative fallback: v7x-sized VMEM
        vmem_cap = 64 * 1024 * 1024
    vmem_limit = int(vmem_cap * 0.75)         # 48 MiB on v7x, 96 MiB on v5e/v6e
    budget = int(vmem_cap * 0.45)             # double-buffered tiles + streaming temporaries
    # bytes per 128-pixel row: pred (x2 buffers) + tgt/negprob/loss (x2 buffers, 4 B each)
    # + ~8 live (TR, 128) f32 accumulators/temporaries of the streaming softmax
    bytes_per_row = 128 * (2 * num_classes * pred_itemsize + 2 * 3 * 4 + 8 * 4)
    rows_budget = max(8, budget // bytes_per_row)
    # keep >= ~8 grid steps so both v7x TensorCores get work and the DMA pipeline overlaps
    min_steps = 8
    want_tiles = max(1, -(-min_steps // batch))
    num_tiles = max(-(-num_rows // rows_budget), want_tiles)
    num_tiles = min(num_tiles, max(1, num_rows // 8))    # at least 8 rows per tile
    tile_rows = -(-num_rows // num_tiles)
    tile_rows = ((tile_rows + 7) // 8) * 8                # sublane multiple
    if tile_rows >= num_rows:
        tile_rows, num_tiles = num_rows, 1                # full extent (any size allowed)
    return tile_rows, num_tiles, vmem_limit


# ------------------------------------------------------------------ forward wrapper
def prob_ohem_ce2d_forward(pred, target, *, ignore_label, thresh=0.6, min_kept=256,
                           reduction='mean', tile_rows=None):
    N, C, H, W = pred.shape
    HW = H * W
    R0 = -(-HW // 128)                        # rows of 128 pixels (lane-dense stores)

    TR, num_tiles, vmem_limit = _choose_tiling(C, jnp.dtype(pred.dtype).itemsize, R0, N)
    if tile_rows is not None:
        TR = max(1, min(int(tile_rows), R0))
        if TR < R0:
            TR = max(8, (TR // 8) * 8)
        num_tiles = -(-R0 // TR)
    R = TR * num_tiles
    HW_pad = R * 128

    # contiguous NCHW -> (N, C, HW) is metadata-only; pad HW once to a multiple of 128*TR so
    # every block is full (unmasked lane-dense stores, no garbage boundary rows).
    pred_flat = pred.reshape(N, C, HW)
    tgt_flat = target.reshape(N, HW).astype(jnp.int32)
    if HW_pad != HW:
        pad = HW_pad - HW
        pred_flat = jnp.pad(pred_flat, ((0, 0), (0, 0), (0, pad)))
        tgt_flat = jnp.pad(tgt_flat, ((0, 0), (0, pad)), constant_values=int(ignore_label))
    pred_r = pred_flat.reshape(N, C, R, 128)
    tgt_r = tgt_flat.reshape(N, R, 128)

    negprob, loss = pl.pallas_call(
        functools.partial(_ohem_prob_loss_kernel, C, int(ignore_label)),
        out_shape=(jax.ShapeDtypeStruct((N, R, 128), jnp.float32),
                   jax.ShapeDtypeStruct((N, R, 128), jnp.float32)),
        grid_spec=pltpu.PrefetchScalarGridSpec(
            num_scalar_prefetch=0,
            grid=(N, num_tiles),
            in_specs=[
                pl.BlockSpec((None, C, TR, 128), lambda n, r: (n, 0, r, 0)),
                pl.BlockSpec((None, TR, 128), lambda n, r: (n, r, 0)),
            ],
            out_specs=[
                pl.BlockSpec((None, TR, 128), lambda n, r: (n, r, 0)),
                pl.BlockSpec((None, TR, 128), lambda n, r: (n, r, 0)),
            ],
        ),
        compiler_params=pltpu.CompilerParams(
            dimension_semantics=("parallel", "parallel"),
            vmem_limit_bytes=int(vmem_limit),
        ),
    )(pred_r, tgt_r)

    negprob_f = negprob.reshape(-1)
    loss_f = loss.reshape(-1)
    P = N * HW                                 # logical (unpadded) pixel count
    num_valid = jnp.sum((tgt_flat != ignore_label).astype(jnp.int32))

    # OHEM threshold: k-th smallest kept probability == -(k-th largest of negprob).
    # The kernel already emits negated probs, so no extra P-length negation pass is needed,
    # and the -2.0 sentinel on ignored/padded pixels cannot enter the top-k whenever the
    # filter is actually applied (k = min_kept <= num_valid, valid probs all > -2.0... ).
    # TODO(synk): no clean in-kernel Pallas sort/top_k on TPU; the exact selection stays in
    # XLA's lax.top_k (per-tile candidate emission or jax.lax.approx_min_k would shrink it
    # further, at the cost of complexity / exactness vs. the torch semantics).
    min_kept = int(min_kept)
    if min_kept > 0:
        k = min(P, min_kept)
        kth_prob = -jax.lax.top_k(negprob_f, k)[0][k - 1]
        thr = jnp.maximum(jnp.float32(thresh), kth_prob)
    else:
        thr = jnp.float32(thresh)

    # torch applies the prob filter only when 0 < num_valid and min_kept <= num_valid;
    # otherwise every valid pixel is kept. 1.5 keeps all valid pixels (prob <= 1.0) while
    # the -2.0 sentinel keeps ignored/padded pixels excluded in both branches.
    filter_on = jnp.logical_and(num_valid > 0, num_valid >= min_kept)
    thr_eff = jnp.where(filter_on, thr, jnp.float32(1.5))

    sel = negprob_f >= -thr_eff                # kept := valid & (prob <= threshold)
    total = jnp.sum(jnp.where(sel, loss_f, 0.0))
    cnt = jnp.sum(sel.astype(jnp.float32))

    if reduction == 'sum':
        return total
    elif reduction == 'mean':
        # TODO(synk): torch returns NaN when no pixel is kept; we return the (zero) sum.
        return jnp.where(cnt > 0, total / jnp.maximum(cnt, 1.0), total)
    else:
        raise NotImplementedError('Reduction Error!')


# ------------------------------------------------------------------ pure-JAX reference
def prob_ohem_ce2d_ref(pred, target, *, ignore_label, thresh=0.6, min_kept=256,
                       reduction='mean'):
    N, C, H, W = pred.shape
    logits = jnp.transpose(pred, (0, 2, 3, 1)).reshape(-1, C).astype(jnp.float32)
    tgt = target.reshape(-1).astype(jnp.int32)
    valid = tgt != ignore_label
    tgt_c = jnp.where(valid, tgt, 0)
    lse = jax.scipy.special.logsumexp(logits, axis=-1)
    logit_t = jnp.take_along_axis(logits, tgt_c[:, None], axis=-1)[:, 0]
    prob_t = jnp.exp(logit_t - lse)
    mask_prob = jnp.where(valid, prob_t, 1.0)              # torch: masked_fill_(~valid, 1)
    num_valid = jnp.sum(valid.astype(jnp.int32))
    P = logits.shape[0]
    min_kept = int(min_kept)
    if min_kept > 0:
        k = min(P, min_kept)
        kth = jnp.sort(mask_prob)[k - 1]
        thr = jnp.maximum(jnp.float32(thresh), kth)
    else:
        thr = jnp.float32(thresh)
    filter_on = jnp.logical_and(num_valid > 0, num_valid >= min_kept)
    kept = jnp.where(filter_on, mask_prob <= thr, True)
    sel = valid & kept
    loss = lse - logit_t
    total = jnp.sum(jnp.where(sel, loss, 0.0))
    cnt = jnp.sum(sel.astype(jnp.float32))
    if reduction == 'sum':
        return total
    return jnp.where(cnt > 0, total / jnp.maximum(cnt, 1.0), total)


if __name__ == "__main__":
    ignore_label = 255

    def make_inputs(key, N, C, H, W):
        kp, kt, km = jax.random.split(key, 3)
        pred = jax.random.normal(kp, (N, C, H, W), jnp.float32)
        target = jax.random.randint(kt, (N, H, W), 0, C).astype(jnp.int32)
        ignore_mask = jax.random.uniform(km, (N, H, W)) < 0.1
        target = jnp.where(ignore_mask, ignore_label, target)
        return pred, target

    pred, target = make_inputs(jax.random.PRNGKey(0), 2, 4, 16, 16)

    # case 1: OHEM filter active (min_kept <= num_valid), mean reduction
    kw1 = dict(ignore_label=ignore_label, thresh=0.6, min_kept=256, reduction='mean')
    out1 = jax.block_until_ready(prob_ohem_ce2d_forward(pred, target, **kw1))
    ref1 = jax.block_until_ready(prob_ohem_ce2d_ref(pred, target, **kw1))
    assert bool(jnp.isfinite(out1)), out1
    assert jnp.allclose(out1, ref1, rtol=1e-4, atol=1e-5), (out1, ref1)

    # case 2: min_kept > num_valid -> plain CE over all valid pixels (no filtering branch)
    kw2 = dict(ignore_label=ignore_label, thresh=0.6, min_kept=10_000, reduction='mean')
    out2 = jax.block_until_ready(prob_ohem_ce2d_forward(pred, target, **kw2))
    ref2 = jax.block_until_ready(prob_ohem_ce2d_ref(pred, target, **kw2))
    assert jnp.allclose(out2, ref2, rtol=1e-4, atol=1e-5), (out2, ref2)

    # case 3: H*W not a multiple of 128 -> exercises the one-time lane pad; sum reduction
    pred3, target3 = make_inputs(jax.random.PRNGKey(1), 2, 4, 20, 20)
    kw3 = dict(ignore_label=ignore_label, thresh=0.6, min_kept=256, reduction='sum')
    out3 = jax.block_until_ready(prob_ohem_ce2d_forward(pred3, target3, **kw3))
    ref3 = jax.block_until_ready(prob_ohem_ce2d_ref(pred3, target3, **kw3))
    assert jnp.allclose(out3, ref3, rtol=1e-4, atol=1e-3), (out3, ref3)

    # case 4: bf16 logits (halves the dominant HBM stream; per-slice f32 cast in-kernel)
    out4 = jax.block_until_ready(
        prob_ohem_ce2d_forward(pred.astype(jnp.bfloat16), target, **kw1))
    ref4 = jax.block_until_ready(
        prob_ohem_ce2d_ref(pred.astype(jnp.bfloat16), target, **kw1))
    assert bool(jnp.isfinite(out4)), out4
    assert jnp.allclose(out4, ref4, rtol=1e-2, atol=1e-3), (out4, ref4)

    print("KERNEL_OK")
</pallas_src>

<mosaic_0001>
module attributes {stable_mosaic.version = 11 : i64} {
  func.func @_ohem_prob_loss_kernel(%arg0: i32, %arg1: i32, %arg2: memref<1x4x2x128xf32, #tpu.memory_space<vmem>>, %arg3: memref<1x2x128xi32, #tpu.memory_space<vmem>>, %arg4: memref<1x2x128xf32, #tpu.memory_space<vmem>>, %arg5: memref<1x2x128xf32, #tpu.memory_space<vmem>>) attributes {dimension_semantics = [#tpu.dimension_semantics<parallel>, #tpu.dimension_semantics<parallel>], iteration_bounds = array<i64: 2, 1>, scalar_prefetch = 0 : i64, scratch_operands = 0 : i64, tpu.core_type = #tpu.core_type<tc>, window_params = [{transform_indices = @transform_0, window_bounds = array<i64: 1, 4, 2, 128>}, {transform_indices = @transform_1, window_bounds = array<i64: 1, 2, 128>}, {transform_indices = @transform_2, window_bounds = array<i64: 1, 2, 128>}, {transform_indices = @transform_3, window_bounds = array<i64: 1, 2, 128>}]} {
    %c0 = arith.constant 0 : index
    %c0_0 = arith.constant 0 : index
    %c0_1 = arith.constant 0 : index
    %0 = vector.load %arg3[%c0, %c0_0, %c0_1] : memref<1x2x128xi32, #tpu.memory_space<vmem>>, vector<1x2x128xi32>
    %1 = vector.shape_cast %0 : vector<1x2x128xi32> to vector<2x128xi32>
    %c255_i32 = arith.constant 255 : i32
    %2 = vector.broadcast %c255_i32 : i32 to vector<2x128xi32>
    %3 = arith.cmpi ne, %1, %2 : vector<2x128xi32>
    %c0_i32 = arith.constant 0 : i32
    %4 = vector.broadcast %c0_i32 : i32 to vector<2x128xi32>
    %5 = arith.select %3, %1, %4 : vector<2x128xi1>, vector<2x128xi32>
    %c0_2 = arith.constant 0 : index
    %c0_3 = arith.constant 0 : index
    %c0_4 = arith.constant 0 : index
    %c0_5 = arith.constant 0 : index
    %6 = vector.load %arg2[%c0_2, %c0_3, %c0_4, %c0_5] : memref<1x4x2x128xf32, #tpu.memory_space<vmem>>, vector<1x1x2x128xf32>
    %7 = vector.shape_cast %6 : vector<1x1x2x128xf32> to vector<2x128xf32>
    %c0_6 = arith.constant 0 : index
    %c1 = arith.constant 1 : index
    %c0_7 = arith.constant 0 : index
    %c0_8 = arith.constant 0 : index
    %8 = vector.load %arg2[%c0_6, %c1, %c0_7, %c0_8] : memref<1x4x2x128xf32, #tpu.memory_space<vmem>>, vector<1x1x2x128xf32>
    %9 = vector.shape_cast %8 : vector<1x1x2x128xf32> to vector<2x128xf32>
    %10 = arith.maximumf %7, %9 : vector<2x128xf32>
    %c0_9 = arith.constant 0 : index
    %c2 = arith.constant 2 : index
    %c0_10 = arith.constant 0 : index
    %c0_11 = arith.constant 0 : index
    %11 = vector.load %arg2[%c0_9, %c2, %c0_10, %c0_11] : memref<1x4x2x128xf32, #tpu.memory_space<vmem>>, vector<1x1x2x128xf32>
    %12 = vector.shape_cast %11 : vector<1x1x2x128xf32> to vector<2x128xf32>
    %13 = arith.maximumf %10, %12 : vector<2x128xf32>
    %c0_12 = arith.constant 0 : index
    %c3 = arith.constant 3 : index
    %c0_13 = arith.constant 0 : index
    %c0_14 = arith.constant 0 : index
    %14 = vector.load %arg2[%c0_12, %c3, %c0_13, %c0_14] : memref<1x4x2x128xf32, #tpu.memory_space<vmem>>, vector<1x1x2x128xf32>
    %15 = vector.shape_cast %14 : vector<1x1x2x128xf32> to vector<2x128xf32>
    %16 = arith.maximumf %13, %15 : vector<2x128xf32>
    %cst = arith.constant 0.000000e+00 : f32
    %17 = vector.broadcast %cst : f32 to vector<2x128xf32>
    %cst_15 = arith.constant 0.000000e+00 : f32
    %18 = vector.broadcast %cst_15 : f32 to vector<2x128xf32>
    %cst_16 = arith.constant 0.000000e+00 : f32
    %19 = vector.broadcast %cst_16 : f32 to vector<2x128xf32>
    %c0_17 = arith.constant 0 : index
    %c0_18 = arith.constant 0 : index
    %c0_19 = arith.constant 0 : index
    %c0_20 = arith.constant 0 : index
    %20 = vector.load %arg2[%c0_17, %c0_18, %c0_19, %c0_20] : memref<1x4x2x128xf32, #tpu.memory_space<vmem>>, vector<1x1x2x128xf32>
    %21 = vector.shape_cast %20 : vector<1x1x2x128xf32> to vector<2x128xf32>
    %22 = arith.subf %21, %16 : vector<2x128xf32>
    %23 = math.exp %22 : vector<2x128xf32>
    %24 = arith.addf %17, %23 : vector<2x128xf32>
    %c0_i32_21 = arith.constant 0 : i32
    %25 = vector.broadcast %c0_i32_21 : i32 to vector<2x128xi32>
    %26 = arith.cmpi eq, %5, %25 : vector<2x128xi32>
    %27 = arith.select %26, %21, %18 : vector<2x128xi1>, vector<2x128xf32>
    %28 = arith.select %26, %23, %19 : vector<2x128xi1>, vector<2x128xf32>
    %c0_22 = arith.constant 0 : index
    %c1_23 = arith.constant 1 : index
    %c0_24 = arith.constant 0 : index
    %c0_25 = arith.constant 0 : index
    %29 = vector.load %arg2[%c0_22, %c1_23, %c0_24, %c0_25] : memref<1x4x2x128xf32, #tpu.memory_space<vmem>>, vector<1x1x2x128xf32>
    %30 = vector.shape_cast %29 : vector<1x1x2x128xf32> to vector<2x128xf32>
    %31 = arith.subf %30, %16 : vector<2x128xf32>
    %32 = math.exp %31 : vector<2x128xf32>
    %33 = arith.addf %24, %32 : vector<2x128xf32>
    %c1_i32 = arith.constant 1 : i32
    %34 = vector.broadcast %c1_i32 : i32 to vector<2x128xi32>
    %35 = arith.cmpi eq, %5, %34 : vector<2x128xi32>
    %36 = arith.select %35, %30, %27 : vector<2x128xi1>, vector<2x128xf32>
    %37 = arith.select %35, %32, %28 : vector<2x128xi1>, vector<2x128xf32>
    %c0_26 = arith.constant 0 : index
    %c2_27 = arith.constant 2 : index
    %c0_28 = arith.constant 0 : index
    %c0_29 = arith.constant 0 : index
    %38 = vector.load %arg2[%c0_26, %c2_27, %c0_28, %c0_29] : memref<1x4x2x128xf32, #tpu.memory_space<vmem>>, vector<1x1x2x128xf32>
    %39 = vector.shape_cast %38 : vector<1x1x2x128xf32> to vector<2x128xf32>
    %40 = arith.subf %39, %16 : vector<2x128xf32>
    %41 = math.exp %40 : vector<2x128xf32>
    %42 = arith.addf %33, %41 : vector<2x128xf32>
    %c2_i32 = arith.constant 2 : i32
    %43 = vector.broadcast %c2_i32 : i32 to vector<2x128xi32>
    %44 = arith.cmpi eq, %5, %43 : vector<2x128xi32>
    %45 = arith.select %44, %39, %36 : vector<2x128xi1>, vector<2x128xf32>
    %46 = arith.select %44, %41, %37 : vector<2x128xi1>, vector<2x128xf32>
    %c0_30 = arith.constant 0 : index
    %c3_31 = arith.constant 3 : index
    %c0_32 = arith.constant 0 : index
    %c0_33 = arith.constant 0 : index
    %47 = vector.load %arg2[%c0_30, %c3_31, %c0_32, %c0_33] : memref<1x4x2x128xf32, #tpu.memory_space<vmem>>, vector<1x1x2x128xf32>
    %48 = vector.shape_cast %47 : vector<1x1x2x128xf32> to vector<2x128xf32>
    %49 = arith.subf %48, %16 : vector<2x128xf32>
    %50 = math.exp %49 : vector<2x128xf32>
    %51 = arith.addf %42, %50 : vector<2x128xf32>
    %c3_i32 = arith.constant 3 : i32
    %52 = vector.broadcast %c3_i32 : i32 to vector<2x128xi32>
    %53 = arith.cmpi eq, %5, %52 : vector<2x128xi32>
    %54 = arith.select %53, %48, %45 : vector<2x128xi1>, vector<2x128xf32>
    %55 = arith.select %53, %50, %46 : vector<2x128xi1>, vector<2x128xf32>
    %56 = math.log %51 : vector<2x128xf32>
    %57 = arith.addf %16, %56 : vector<2x128xf32>
    %58 = arith.divf %55, %51 : vector<2x128xf32>
    %cst_34 = arith.constant 0.000000e+00 : f32
    %59 = vector.broadcast %cst_34 : f32 to vector<2x128xf32>
    %60 = arith.subf %59, %58 : vector<2x128xf32>
    %cst_35 = arith.constant -2.000000e+00 : f32
    %61 = vector.broadcast %cst_35 : f32 to vector<2x128xf32>
    %62 = arith.select %3, %60, %61 : vector<2x128xi1>, vector<2x128xf32>
    %c0_36 = arith.constant 0 : index
    %c0_37 = arith.constant 0 : index
    %c0_38 = arith.constant 0 : index
    %63 = vector.load %arg4[%c0_36, %c0_37, %c0_38] : memref<1x2x128xf32, #tpu.memory_space<vmem>>, vector<1x2x128xf32>
    %64 = vector.shape_cast %63 : vector<1x2x128xf32> to vector<2x128xf32>
    %65 = vector.shape_cast %62 : vector<2x128xf32> to vector<1x2x128xf32>
    tpu.vector_store %arg4[%c0_36, %c0_37, %c0_38], %65 {strides = array<i32>} : memref<1x2x128xf32, #tpu.memory_space<vmem>>, vector<1x2x128xf32>,
    %66 = arith.subf %57, %54 : vector<2x128xf32>
    %cst_39 = arith.constant 0.000000e+00 : f32
    %67 = vector.broadcast %cst_39 : f32 to vector<2x128xf32>
    %68 = arith.select %3, %66, %67 : vector<2x128xi1>, vector<2x128xf32>
    %c0_40 = arith.constant 0 : index
    %c0_41 = arith.constant 0 : index
    %c0_42 = arith.constant 0 : index
    %69 = vector.load %arg5[%c0_40, %c0_41, %c0_42] : memref<1x2x128xf32, #tpu.memory_space<vmem>>, vector<1x2x128xf32>
    %70 = vector.shape_cast %69 : vector<1x2x128xf32> to vector<2x128xf32>
    %71 = vector.shape_cast %68 : vector<2x128xf32> to vector<1x2x128xf32>
    tpu.vector_store %arg5[%c0_40, %c0_41, %c0_42], %71 {strides = array<i32>} : memref<1x2x128xf32, #tpu.memory_space<vmem>>, vector<1x2x128xf32>,
    return
  }
  func.func @transform_0(%arg0: i32, %arg1: i32) -> (i32, i32, i32, i32) {
    %c0_i32 = arith.constant 0 : i32
    %c0_i32_0 = arith.constant 0 : i32
    %c0_i32_1 = arith.constant 0 : i32
    return %arg0, %c0_i32, %arg1, %c0_i32_0 : i32, i32, i32, i32
  }
  func.func @transform_1(%arg0: i32, %arg1: i32) -> (i32, i32, i32) {
    %c0_i32 = arith.constant 0 : i32
    %c0_i32_0 = arith.constant 0 : i32
    return %arg0, %arg1, %c0_i32 : i32, i32, i32
  }
  func.func @transform_2(%arg0: i32, %arg1: i32) -> (i32, i32, i32) {
    %c0_i32 = arith.constant 0 : i32
    %c0_i32_0 = arith.constant 0 : i32
    return %arg0, %arg1, %c0_i32 : i32, i32, i32
  }
  func.func @transform_3(%arg0: i32, %arg1: i32) -> (i32, i32, i32) {
    %c0_i32 = arith.constant 0 : i32
    %c0_i32_0 = arith.constant 0 : i32
    return %arg0, %arg1, %c0_i32 : i32, i32, i32
  }
}

</mosaic_0001>

<llo_original>
// kernel: tpu_custom_call.1
$region0: #{tpu_custom_call.1}
  #allocation0 [shape = 'u32[]', space=smem, size = 0x4, offset = 0x4, fixed_abs, tag = 'smem constant byte address 0x4 - core index']
  #allocation1 [shape = 'u32[144,128]{1,0:T(1,128)}', space=vmem, size = 0x12000, scoped, tag = 'internal scratch']
  %s0 = inlined_call_operand.hbm [shape: f32[2,4,2,128], index: 0, kind: input, shape index: {}]
  %s1 = inlined_call_operand.hbm [shape: s32[2,2,128], index: 1, kind: input, shape index: {}]
  %s2 = inlined_call_operand.hbm [shape: f32[2,2,128], index: 2, kind: output, shape index: {0}]
  %s3 = inlined_call_operand.hbm [shape: f32[2,2,128], index: 3, kind: output, shape index: {1}]
  %4 = xla_tuple %s2, %s3
  %s5 = sld [smem:[#allocation0]]
  $region57: #{tpu_custom_call.1} parent=0
    _
  %s7 = ssub.s32 1, %s5
  %s8 = scalar_select 0, %s7, %s5
  $region1: #{tpu_custom_call.1} parent=0
    #allocation2 [shape = 'u8[8192]{0}', space=vmem, size = 0x2000, scoped, tag = 'input window, operand 0']
    #allocation3 [shape = 's32[2]{0}', space=sflag, size = 0x8, scoped, tag = 'scoped memory for tpu_custom_call.1']
    #allocation4 [shape = 's32[2]{0}', space=sflag, size = 0x8, scoped, tag = 'scoped memory for tpu_custom_call.1']
    #allocation5 [shape = 'u8[2048]{0}', space=vmem, size = 0x800, scoped, tag = 'input window, operand 1']
    #allocation6 [shape = 's32[2]{0}', space=sflag, size = 0x8, scoped, tag = 'scoped memory for tpu_custom_call.1']
    #allocation7 [shape = 'u8[2048]{0}', space=vmem, size = 0x800, scoped, tag = 'output window, operand 0']
    #allocation8 [shape = 'u8[2048]{0}', space=vmem, size = 0x800, scoped, tag = 'output window, operand 1']
    #allocation9 [shape = 's32[2]{0}', space=sflag, size = 0x8, scoped, tag = 'scoped memory for tpu_custom_call.1']
    %9 = vsyncpa [#allocation3], 0
    %s10 = scalar_lea.sflag [#allocation3], 1
    %11 = vsyncpa %s10, 0
    %12 = vsyncpa [#allocation6], 0
    %s13 = scalar_lea.sflag [#allocation6], 1
    %14 = vsyncpa %s13, 0
    %15 = vsyncpa [#allocation4], 0
    %s16 = scalar_lea.sflag [#allocation4], 1
    %17 = vsyncpa %s16, 0
    %18 = vsyncpa [#allocation9], 0
    %s19 = scalar_lea.sflag [#allocation9], 1
    %20 = vsyncpa %s19, 0
    loop: start=0, step=1, limit=4
    $region2: #{tpu_custom_call.1} parent=1 // loop_pre_header
      _
    $region3: #{tpu_custom_call.1} parent=1 // loop_header
      %s22 = sphi 0, %s26
      %p23 = scmp.ge.s32.totalorder %s22, 4
      %s29 = sphi 0, %s41
      %s30 = sphi 0, %s37
      %s31 = sphi 0, %s29
      %s32 = sphi 0, %s30
      %s33 = sphi 0, %s31
      %s34 = sphi 0, %s32
      %s46 = sphi 0, %s48
      %s49 = sphi 0, %s46
      %s50 = sphi 0, %s49
      %s66 = sphi 0, %s50
      %s74 = sphi 0, %s76
      %s77 = sphi 0, %s74
      %s78 = sphi 0, %s77
      %s94 = sphi 0, %s78
      %s102 = sphi 0, %s104
      %s105 = sphi 0, %s102
      %s106 = sphi 0, %s105
      %s122 = sphi 0, %s106
      %s130 = sphi 0, %s132
      %s133 = sphi 0, %s130
      %s134 = sphi 0, %s133
      %s150 = sphi 0, %s134
    $region4: #{tpu_custom_call.1} parent=1 // loop_header_branch
      %25 = sbr.rel (%p23) target = $region8
    $region5: #{tpu_custom_call.1} parent=1 // loop_body
      %s27 = ssub.s32 %s22, 1
      %s28 = ssub.s32 %s22, 2
      %s35 = sadd.s32 1, %s30
      %p36 = scmp.ge.s32.totalorder %s35, 1
      %s37 = scalar_select %p36, 0, %s35
      %s38 = sadd.s32 1, %s29
      %s39 = scalar_select %p36, %s38, %s29
      %p40 = scmp.ge.s32.totalorder %s39, 2
      %s41 = scalar_select %p40, 0, %s39
      %s42 = ssub.s32 %s29, %s41
      %s43 = ssub.s32 %s30, %s37
      %s44 = sor.u32 %s42, %s43
      %p45 = scmp.eq.s32.totalorder %s44, 0
      %s47 = sadd.s32 %s46, 1
      %s48 = scalar_select %p45, %s46, %s47
      %p51 = pneg %p45
      %p52 = scmp.eq.s32.totalorder %s22, 1
      %p53 = por %p51, %p52
      %p54 = scmp.ne.s32.totalorder %s46, %s49
      %p55 = scmp.eq.s32.totalorder %s22, 0
      %p56 = por %p54, %p55
      %p57 = scmp.ne.s32.totalorder %s46, %s49
      %p58 = scmp.eq.s32.totalorder %s27, 1
      %p59 = por %p57, %p58
      %p60 = scmp.ne.s32.totalorder %s49, %s50
      %p61 = scmp.eq.s32.totalorder %s27, 0
      %p62 = por %p60, %p61
      %p63 = scmp.ne.s32.totalorder %s49, %s50
      %p64 = scmp.eq.s32.totalorder %s28, 1
      %p65 = por %p63, %p64
      %p67 = scmp.ne.s32.totalorder %s50, %s66
      %p68 = scmp.eq.s32.totalorder %s28, 0
      %p69 = por %p67, %p68
      %s70 = ssub.s32 %s29, %s41
      %s71 = ssub.s32 %s30, %s37
      %s72 = sor.u32 %s70, %s71
      %p73 = scmp.eq.s32.totalorder %s72, 0
      %s75 = sadd.s32 %s74, 1
      %s76 = scalar_select %p73, %s74, %s75
      %p79 = pneg %p73
      %p80 = scmp.eq.s32.totalorder %s22, 1
      %p81 = por %p79, %p80
      %p82 = scmp.ne.s32.totalorder %s74, %s77
      %p83 = scmp.eq.s32.totalorder %s22, 0
      %p84 = por %p82, %p83
      %p85 = scmp.ne.s32.totalorder %s74, %s77
      %p86 = scmp.eq.s32.totalorder %s27, 1
      %p87 = por %p85, %p86
      %p88 = scmp.ne.s32.totalorder %s77, %s78
      %p89 = scmp.eq.s32.totalorder %s27, 0
      %p90 = por %p88, %p89
      %p91 = scmp.ne.s32.totalorder %s77, %s78
      %p92 = scmp.eq.s32.totalorder %s28, 1
      %p93 = por %p91, %p92
      %p95 = scmp.ne.s32.totalorder %s78, %s94
      %p96 = scmp.eq.s32.totalorder %s28, 0
      %p97 = por %p95, %p96
      %s98 = ssub.s32 %s29, %s41
      %s99 = ssub.s32 %s30, %s37
      %s100 = sor.u32 %s98, %s99
      %p101 = scmp.eq.s32.totalorder %s100, 0
      %s103 = sadd.s32 %s102, 1
      %s104 = scalar_select %p101, %s102, %s103
      %p107 = pneg %p101
      %p108 = scmp.eq.s32.totalorder %s22, 1
      %p109 = por %p107, %p108
      %p110 = scmp.ne.s32.totalorder %s102, %s105
      %p111 = scmp.eq.s32.totalorder %s22, 0
      %p112 = por %p110, %p111
      %p113 = scmp.ne.s32.totalorder %s102, %s105
      %p114 = scmp.eq.s32.totalorder %s27, 1
      %p115 = por %p113, %p114
      %p116 = scmp.ne.s32.totalorder %s105, %s106
      %p117 = scmp.eq.s32.totalorder %s27, 0
      %p118 = por %p116, %p117
      %p119 = scmp.ne.s32.totalorder %s105, %s106
      %p120 = scmp.eq.s32.totalorder %s28, 1
      %p121 = por %p119, %p120
      %p123 = scmp.ne.s32.totalorder %s106, %s122
      %p124 = scmp.eq.s32.totalorder %s28, 0
      %p125 = por %p123, %p124
      %s126 = ssub.s32 %s29, %s41
      %s127 = ssub.s32 %s30, %s37
      %s128 = sor.u32 %s126, %s127
      %p129 = scmp.eq.s32.totalorder %s128, 0
      %s131 = sadd.s32 %s130, 1
      %s132 = scalar_select %p129, %s130, %s131
      %p135 = pneg %p129
      %p136 = scmp.eq.s32.totalorder %s22, 1
      %p137 = por %p135, %p136
      %p138 = scmp.ne.s32.totalorder %s130, %s133
      %p139 = scmp.eq.s32.totalorder %s22, 0
      %p140 = por %p138, %p139
      %p141 = scmp.ne.s32.totalorder %s130, %s133
      %p142 = scmp.eq.s32.totalorder %s27, 1
      %p143 = por %p141, %p142
      %p144 = scmp.ne.s32.totalorder %s133, %s134
      %p145 = scmp.eq.s32.totalorder %s27, 0
      %p146 = por %p144, %p145
      %p147 = scmp.ne.s32.totalorder %s133, %s134
      %p148 = scmp.eq.s32.totalorder %s28, 1
      %p149 = por %p147, %p148
      %p151 = scmp.ne.s32.totalorder %s134, %s150
      %p152 = scmp.eq.s32.totalorder %s28, 0
      %p153 = por %p151, %p152
      %p154 = scmp.le.s32.totalorder 1, %s22
      %p155 = scmp.lt.s32.totalorder %s22, 3
      %p156 = pnand %p154, %p155
      %p157 = pneg %p156
      // Predicated region
      $region9: #{tpu_custom_call.1} parent=5 // pred_check
        _
      $region10: #{tpu_custom_call.1} parent=5 // pred_check_branch
        %159 = sbr.rel (%p156) target = $region12
      $region11: #{tpu_custom_call.1} parent=5 // pred_region
        %s160 = ssub.s32 %s22, 1
      $region12: #{tpu_custom_call.1} parent=5 // pred_fallthru
        _
      %p161 = scmp.lt.s32.totalorder %s22, 2
      // Predicated region
      $region13: #{tpu_custom_call.1} parent=5 // pred_check
        %p162 = pneg %p161
      $region14: #{tpu_custom_call.1} parent=5 // pred_check_branch
        %164 = sbr.rel (%p162) target = $region16
      $region15: #{tpu_custom_call.1} parent=5 // pred_region
        // Predicated region
        $region17: #{tpu_custom_call.1} parent=15 // pred_check
          %p165 = pneg %p56
        $region18: #{tpu_custom_call.1} parent=15 // pred_check_branch
          %167 = sbr.rel (%p165) target = $region20
        $region19: #{tpu_custom_call.1} parent=15 // pred_region
          %s168 = sand.u32 %s46, 1
          %s169 = scalar_lea.sflag [#allocation3], %s168
          %s170 = sand.u32 %s46, 1
          %s171 = smul.addr %s170, 8
          %s172 = scalar_lea.vmem [#allocation2], %s171
          %s174 = ssub.s32 128, 128
          %175 = vsyncadd %s169, %s174
          %s176 = smul.addr %s29, 4
          %s177 = sadd.s32 %s30, %s176
          %s178 = smul.addr %s177, 32
          %s179 = scalar_lea.hbm %s0, %s178
          %s180 = sshll.u32 %s172, 4
          %s181 = int_to_ptr.vmem [resolvable:$true] %s180
          %186 = dma.hbm_to_vmem [thread:$0]  %s179, 128, %s181, %s169, 32, 32, 2
        $region20: #{tpu_custom_call.1} parent=15 // pred_fallthru
          _
        // Predicated region
        $region21: #{tpu_custom_call.1} parent=15 // pred_check
          %p187 = pneg %p84
        $region22: #{tpu_custom_call.1} parent=15 // pred_check_branch
          %189 = sbr.rel (%p187) target = $region24
        $region23: #{tpu_custom_call.1} parent=15 // pred_region
          %s190 = sand.u32 %s74, 1
          %s191 = scalar_lea.sflag [#allocation6], %s190
          %s192 = sand.u32 %s74, 1
          %s193 = smul.addr %s192, 2
          %s194 = scalar_lea.vmem [#allocation5], %s193
          %s196 = ssub.s32 32, 32
          %197 = vsyncadd %s191, %s196
          %s198 = sadd.s32 %s30, %s29
          %s199 = smul.addr %s198, 32
          %s200 = scalar_lea.hbm %s1, %s199
          %s202 = sshll.u32 %s194, 4
          %s203 = int_to_ptr.vmem [resolvable:$true] %s202
          %205 = dma.hbm_to_vmem [thread:$0]  %s200, 32, %s203, %s191
        $region24: #{tpu_custom_call.1} parent=15 // pred_fallthru
          _
      $region16: #{tpu_custom_call.1} parent=5 // pred_fallthru
        _
      %p206 = scmp.le.s32.totalorder 1, %s22
      %p207 = scmp.lt.s32.totalorder %s22, 3
      %p208 = pnand %p206, %p207
      %p209 = pneg %p208
      // Predicated region
      $region25: #{tpu_custom_call.1} parent=5 // pred_check
        _
      $region26: #{tpu_custom_call.1} parent=5 // pred_check_branch
        %211 = sbr.rel (%p208) target = $region28
      $region27: #{tpu_custom_call.1} parent=5 // pred_region
        %s212 = ssub.s32 %s22, 1
        %s213 = sand.u32 %s49, 1
        %s214 = scalar_lea.sflag [#allocation3], %s213
        %s215 = sand.u32 %s49, 1
        %s216 = smul.addr %s215, 8
        %s217 = scalar_lea.vmem [#allocation2], %s216
        // Predicated region
        $region29: #{tpu_custom_call.1} parent=27 // pred_check
          %p218 = pneg %p62
        $region30: #{tpu_custom_call.1} parent=27 // pred_check_branch
          %220 = sbr.rel (%p218) target = $region32
        $region31: #{tpu_custom_call.1} parent=27 // pred_region
          %221 = dma.done %s214, 128
        $region32: #{tpu_custom_call.1} parent=27 // pred_fallthru
          _
        %s222 = sand.u32 %s77, 1
        %s223 = scalar_lea.sflag [#allocation6], %s222
        %s224 = sand.u32 %s77, 1
        %s225 = smul.addr %s224, 2
        %s226 = scalar_lea.vmem [#allocation5], %s225
        // Predicated region
        $region33: #{tpu_custom_call.1} parent=27 // pred_check
          %p227 = pneg %p90
        $region34: #{tpu_custom_call.1} parent=27 // pred_check_branch
          %229 = sbr.rel (%p227) target = $region36
        $region35: #{tpu_custom_call.1} parent=27 // pred_region
          %230 = dma.done %s223, 32
        $region36: #{tpu_custom_call.1} parent=27 // pred_fallthru
          _
        %s231 = sand.u32 %s49, 1
        %s232 = scalar_lea.sflag [#allocation3], %s231
        %s233 = sand.u32 %s49, 1
        %s234 = smul.addr %s233, 8
        %s235 = scalar_lea.vmem [#allocation2], %s234
        %p236 = pneg %p62
        %p237 = pneg %p59
        %s238 = sand.u32 %s77, 1
        %s239 = scalar_lea.sflag [#allocation6], %s238
        %s240 = sand.u32 %s77, 1
        %s241 = smul.addr %s240, 2
        %s242 = scalar_lea.vmem [#allocation5], %s241
        %p243 = pneg %p90
        %p244 = pneg %p87
        %p245 = pneg %p118
        %p246 = pneg %p115
        %s247 = sand.u32 %s105, 1
        %s248 = scalar_lea.sflag [#allocation4], %s247
        %s249 = sand.u32 %s105, 1
        %s250 = smul.addr %s249, 2
        %s251 = scalar_lea.vmem [#allocation7], %s250
        %p252 = pneg %p146
        %p253 = pneg %p143
        %s254 = sand.u32 %s133, 1
        %s255 = scalar_lea.sflag [#allocation9], %s254
        %s256 = sand.u32 %s133, 1
        %s257 = smul.addr %s256, 2
        %s258 = scalar_lea.vmem [#allocation8], %s257
        %v259 = vld [vmem:[%s226] sm:$0x3]
        %vm260 = vcmp.ne.s32.totalorder %v259, 255
        %v261 = vsel %vm260, %v259, 0
        %v262 = vld [vmem:[%s217] sm:$0x3]
        %s263 = scalar_lea.vmem %s217, 2 [#allocation2]
        %v264 = vld [vmem:[%s263] sm:$0x3]
        %v265 = vmax.f32 %v262, %v264
        %s266 = scalar_lea.vmem %s217, 4 [#allocation2]
        %v267 = vld [vmem:[%s266] sm:$0x3]
        %v268 = vmax.f32 %v265, %v267
        %s269 = scalar_lea.vmem %s217, 6 [#allocation2]
        %v270 = vld [vmem:[%s269] sm:$0x3]
        %v271 = vmax.f32 %v268, %v270
        %v272 = vsub.f32 %v262, %v271
        %v273 = vmul.f32 %v272, 1.442695
        %v274 = vpow.pop %v273
        %v275 = vadd.f32 %v274, 0.0
        %vm276 = vcmp.eq.s32.totalorder %v261, 0
        %v277 = vsel %vm276, %v262, 0.0
        %v278 = vsel %vm276, %v274, 0.0
        %v279 = vsub.f32 %v264, %v271
        %v280 = vmul.f32 %v279, 1.442695
        %v281 = vpow.pop %v280
        %v282 = vadd.f32 %v275, %v281
        %vm283 = vcmp.eq.s32.totalorder %v261, 1
        %v284 = vsel %vm283, %v264, %v277
        %v285 = vsel %vm283, %v281, %v278
        %v286 = vsub.f32 %v267, %v271
        %v287 = vmul.f32 %v286, 1.442695
        %v288 = vpow.pop %v287
        %v289 = vadd.f32 %v282, %v288
        %vm290 = vcmp.eq.s32.totalorder %v261, 2
        %v291 = vsel %vm290, %v267, %v284
        %v292 = vsel %vm290, %v288, %v285
        %v293 = vsub.f32 %v270, %v271
        %v294 = vmul.f32 %v293, 1.442695
        %v295 = vpow.pop %v294
        %v296 = vadd.f32 %v289, %v295
        %vm297 = vcmp.eq.s32.totalorder %v261, 3
        %v298 = vsel %vm297, %v270, %v291
        %v299 = vsel %vm297, %v295, %v292
        %v300 = vlog2.pop %v296
        %v301 = vmul.f32 %v300, 0.6931472
        %v302 = vadd.f32 %v271, %v301
        %v303 = vrcp.pop %v296
        %v304 = vmul.f32 %v299, %v303
        %v305 = vsub.f32 0.0, %v304
        %v306 = vsel %vm260, %v305, -2.0
        %307 = vst [vmem:[%s251] sm:$0x3] %v306
        %v308 = vsub.f32 %v302, %v298
        %v309 = vsel %vm260, %v308, 0.0
        %310 = vst [vmem:[%s258] sm:$0x3] %v309
        %s311 = sand.u32 %s105, 1
        %s312 = scalar_lea.sflag [#allocation4], %s311
        %s313 = sand.u32 %s105, 1
        %s314 = smul.addr %s313, 2
        %s315 = scalar_lea.vmem [#allocation7], %s314
        %s316 = sand.u32 %s133, 1
        %s317 = scalar_lea.sflag [#allocation9], %s316
        %s318 = sand.u32 %s133, 1
        %s319 = smul.addr %s318, 2
        %s320 = scalar_lea.vmem [#allocation8], %s319
        // Predicated region
        $region37: #{tpu_custom_call.1} parent=27 // pred_check
          %p321 = pneg %p115
        $region38: #{tpu_custom_call.1} parent=27 // pred_check_branch
          %323 = sbr.rel (%p321) target = $region40
        $region39: #{tpu_custom_call.1} parent=27 // pred_region
          %s325 = ssub.s32 32, 32
          %326 = vsyncadd %s312, %s325
          %s327 = sadd.s32 %s32, %s31
          %s328 = smul.addr %s327, 32
          %s329 = scalar_lea.hbm %s2, %s328
          %s331 = sshll.u32 %s315, 4
          %s332 = int_to_ptr.vmem [resolvable:$true] %s331
          %334 = dma.vmem_to_hbm [thread:$0]  %s332, 32, %s329, %s312
        $region40: #{tpu_custom_call.1} parent=27 // pred_fallthru
          _
        // Predicated region
        $region41: #{tpu_custom_call.1} parent=27 // pred_check
          %p335 = pneg %p143
        $region42: #{tpu_custom_call.1} parent=27 // pred_check_branch
          %337 = sbr.rel (%p335) target = $region44
        $region43: #{tpu_custom_call.1} parent=27 // pred_region
          %s339 = ssub.s32 32, 32
          %340 = vsyncadd %s317, %s339
          %s341 = sadd.s32 %s32, %s31
          %s342 = smul.addr %s341, 32
          %s343 = scalar_lea.hbm %s3, %s342
          %s345 = sshll.u32 %s320, 4
          %s346 = int_to_ptr.vmem [resolvable:$true] %s345
          %348 = dma.vmem_to_hbm [thread:$0]  %s346, 32, %s343, %s317
        $region44: #{tpu_custom_call.1} parent=27 // pred_fallthru
          _
      $region28: #{tpu_custom_call.1} parent=5 // pred_fallthru
        _
      %p349 = scmp.le.s32.totalorder 2, %s22
      // Predicated region
      $region45: #{tpu_custom_call.1} parent=5 // pred_check
        %p350 = pneg %p349
      $region46: #{tpu_custom_call.1} parent=5 // pred_check_branch
        %352 = sbr.rel (%p350) target = $region48
      $region47: #{tpu_custom_call.1} parent=5 // pred_region
        %s353 = ssub.s32 %s22, 2
        // Predicated region
        $region49: #{tpu_custom_call.1} parent=47 // pred_check
          %p354 = pneg %p121
        $region50: #{tpu_custom_call.1} parent=47 // pred_check_branch
          %356 = sbr.rel (%p354) target = $region52
        $region51: #{tpu_custom_call.1} parent=47 // pred_region
          %s357 = sand.u32 %s106, 1
          %s358 = scalar_lea.sflag [#allocation4], %s357
          %s359 = sand.u32 %s106, 1
          %s360 = smul.addr %s359, 2
          %s361 = scalar_lea.vmem [#allocation7], %s360
          %362 = dma.done %s358, 32
        $region52: #{tpu_custom_call.1} parent=47 // pred_fallthru
          _
        // Predicated region
        $region53: #{tpu_custom_call.1} parent=47 // pred_check
          %p363 = pneg %p149
        $region54: #{tpu_custom_call.1} parent=47 // pred_check_branch
          %365 = sbr.rel (%p363) target = $region56
        $region55: #{tpu_custom_call.1} parent=47 // pred_region
          %s366 = sand.u32 %s134, 1
          %s367 = scalar_lea.sflag [#allocation9], %s366
          %s368 = sand.u32 %s134, 1
          %s369 = smul.addr %s368, 2
          %s370 = scalar_lea.vmem [#allocation8], %s369
          %371 = dma.done %s367, 32
        $region56: #{tpu_custom_call.1} parent=47 // pred_fallthru
          _
      $region48: #{tpu_custom_call.1} parent=5 // pred_fallthru
        _
    $region6: #{tpu_custom_call.1} parent=1 // loop_footer
      %s26 = sadd.s32 1, %s22
    $region7: #{tpu_custom_call.1} parent=1 // loop_footer_branch
      %21 = sbr.rel target = $region3
    $region8: #{tpu_custom_call.1} parent=1 // loop_exit
      _
    %372 = vsyncpa [#allocation3], 1
    %s373 = scalar_lea.sflag [#allocation3], 1
    %374 = vsyncpa %s373, 1
    %375 = vsyncpa [#allocation6], 1
    %s376 = scalar_lea.sflag [#allocation6], 1
    %377 = vsyncpa %s376, 1
    %378 = vsyncpa [#allocation4], 1
    %s379 = scalar_lea.sflag [#allocation4], 1
    %380 = vsyncpa %s379, 1
    %381 = vsyncpa [#allocation9], 1
    %s382 = scalar_lea.sflag [#allocation9], 1
    %383 = vsyncpa %s382, 1

</llo_original>
